<compile_context>
chip_gen: v7x
topology: tpu7x:2x2x1
jax: 0.10.0
libtpu: 0.0.40
codegen_flags: <defaults>
</compile_context>

<pallas_src>
import functools

import jax
import jax.numpy as jnp
from jax.experimental import pallas as pl
from jax.experimental.pallas import tpu as pltpu


def _generator_kernel(z_ref, w1_ref, b1_ref, w2_ref, b2_ref, w3_ref, b3_ref,
                      o_ref, *, noise_is_1, use_bf16_matmul):
    """One batch tile of the fused MLP forward, transposed (batch on lanes).

    z_ref : (noise_dim, TM)    -- streamed per grid step (lane-dense)
    w1_ref: (H, noise_dim)     b1_ref: (H, 1)        -- resident in VMEM
    w2_ref: (H, H)             b2_ref: (H, 1)
    w3_ref: (out_dim, H)       b3_ref: (out_dim, 1)
    o_ref : (out_dim, TM)      -- lane-dense output slab
    """
    neg = jnp.float32(0.2)

    zt = z_ref[...]                                    # (noise_dim, TM) f32

    # ---- Layer 1: Linear + LeakyReLU --------------------------------------
    if noise_is_1:
        # K == 1: broadcast outer product on the VPU; keeps the MXU free and
        # avoids a degenerate K=1 systolic pass.
        h = w1_ref[...] * zt + b1_ref[...]             # (H,1)*(1,TM) -> (H,TM)
    else:
        h = jnp.dot(w1_ref[...], zt,
                    preferred_element_type=jnp.float32) + b1_ref[...]
    h = jnp.maximum(h, neg * h)                        # LeakyReLU(0.2)

    # ---- Layer 2: the one real MXU matmul  (H,H)@(H,TM) -------------------
    if use_bf16_matmul:
        # Optional v6e/v7x throughput mode (2x256^2 bf16 MXU); changes forward
        # numerics vs the f32 PyTorch reference -- off by default.
        h = jnp.dot(w2_ref[...].astype(jnp.bfloat16), h.astype(jnp.bfloat16),
                    preferred_element_type=jnp.float32)
    else:
        h = jnp.dot(w2_ref[...], h, preferred_element_type=jnp.float32)
    h = h + b2_ref[...]
    h = jnp.maximum(h, neg * h)

    # ---- Layer 3: (out_dim,H)@(H,TM) -> lane-dense (out_dim,TM) result ----
    out = jnp.dot(w3_ref[...], h,
                  preferred_element_type=jnp.float32) + b3_ref[...]
    o_ref[...] = out.astype(o_ref.dtype)


def generator_forward(z, params, *, tile_m=2048, use_bf16_matmul=False,
                      core_parallel=False):
    """Fused Generator forward via pallas_call.

    z: (B, noise_dim) float32
    params (PyTorch layout): W1 (H, noise_dim), b1 (H,), W2 (H, H), b2 (H,),
                             W3 (out_dim, H),   b3 (out_dim,)
    returns: (B, out_dim) float32
    """
    B, noise_dim = z.shape
    W1, b1 = params["W1"], params["b1"]
    W2, b2 = params["W2"], params["b2"]
    W3, b3 = params["W3"], params["b3"]
    H = W1.shape[0]
    out_dim = W3.shape[0]
    noise_is_1 = (noise_dim == 1)

    # Lane-dense layout: batch is the lane axis, so tiles must be 128-wide.
    tile_m = max(128, (tile_m // 128) * 128)
    b_pad128 = pl.cdiv(B, 128) * 128
    tm = min(tile_m, b_pad128)
    b_pad = pl.cdiv(b_pad128, tm) * tm
    grid = (b_pad // tm,)

    # Transposed, zero-padded input slab (noise_dim, b_pad).
    zt = jnp.zeros((noise_dim, b_pad), jnp.float32).at[:, :B].set(z.T)

    # Biases as resident column vectors so they broadcast over the lane axis.
    b1c = b1.reshape(H, 1).astype(jnp.float32)
    b2c = b2.reshape(H, 1).astype(jnp.float32)
    b3c = b3.reshape(out_dim, 1).astype(jnp.float32)

    resident = lambda a: pl.BlockSpec(a.shape, lambda i: (0,) * a.ndim)
    in_specs = [
        pl.BlockSpec((noise_dim, tm), lambda i: (0, i)),   # z: streamed, lane-dense
        resident(W1), resident(b1c),
        resident(W2), resident(b2c),
        resident(W3), resident(b3c),
    ]
    out_specs = pl.BlockSpec((out_dim, tm), lambda i: (0, i))

    flops = 2 * b_pad * (noise_dim * H + H * H + H * out_dim) + 4 * b_pad * H
    bytes_accessed = 4 * (b_pad * noise_dim + b_pad * out_dim
                          + noise_dim * H + H + H * H + H + H * out_dim + out_dim)
    cost = pl.CostEstimate(flops=flops, transcendentals=0,
                           bytes_accessed=bytes_accessed)

    # Default "parallel" is portable everywhere; CORE_PARALLEL is the opt-in
    # v7x mode that actually shards the batch grid across the two TensorCores.
    batch_sem = pltpu.CORE_PARALLEL if core_parallel else "parallel"

    out_t = pl.pallas_call(
        functools.partial(_generator_kernel,
                          noise_is_1=noise_is_1,
                          use_bf16_matmul=use_bf16_matmul),
        out_shape=jax.ShapeDtypeStruct((out_dim, b_pad), jnp.float32),
        grid=grid,
        in_specs=in_specs,
        out_specs=out_specs,
        compiler_params=pltpu.CompilerParams(
            dimension_semantics=(batch_sem,)),
        cost_estimate=cost,
    )(zt, W1, b1c, W2, b2c, W3, b3c)

    return out_t.T[:B]                                  # (B, out_dim)


def init_generator_params(key, noise_dim=1, hidden_dim=128, output_dim=1):
    """PyTorch nn.Linear default init: U(-1/sqrt(fan_in), 1/sqrt(fan_in)).
    Weights stored PyTorch-style: (out_features, in_features)."""
    ks = jax.random.split(key, 6)

    def linear(kw, kb, fan_in, fan_out):
        bound = 1.0 / jnp.sqrt(jnp.float32(fan_in))
        w = jax.random.uniform(kw, (fan_out, fan_in), jnp.float32,
                               minval=-bound, maxval=bound)
        b = jax.random.uniform(kb, (fan_out,), jnp.float32,
                               minval=-bound, maxval=bound)
        return w, b

    W1, b1 = linear(ks[0], ks[1], noise_dim, hidden_dim)
    W2, b2 = linear(ks[2], ks[3], hidden_dim, hidden_dim)
    W3, b3 = linear(ks[4], ks[5], hidden_dim, output_dim)
    return {"W1": W1, "b1": b1, "W2": W2, "b2": b2, "W3": W3, "b3": b3}


def _reference_forward(z, p):
    """Pure-JAX reference matching PyTorch forward exactly (f32)."""
    lrelu = lambda x: jnp.where(x > 0, x, 0.2 * x)
    h = lrelu(z @ p["W1"].T + p["b1"])
    h = lrelu(h @ p["W2"].T + p["b2"])
    return h @ p["W3"].T + p["b3"]


if __name__ == "__main__":
    key = jax.random.PRNGKey(0)
    k_params, k_z1, k_z2, k_z3 = jax.random.split(key, 4)

    noise_dim, hidden_dim, output_dim = 1, 128, 1
    params = init_generator_params(k_params, noise_dim, hidden_dim, output_dim)

    ok = True
    # (batch, tile_m): single small tile, multi-step grid, and default big tile.
    for k_z, batch, tm in ((k_z1, 8, 2048), (k_z2, 512, 256), (k_z3, 512, 2048)):
        z = jax.random.normal(k_z, (batch, noise_dim), dtype=jnp.float32)
        out = jax.block_until_ready(generator_forward(z, params, tile_m=tm))
        ref = _reference_forward(z, params)
        ok &= out.shape == (batch, output_dim)
        ok &= bool(jnp.allclose(out, ref, atol=1e-4, rtol=1e-4))

    assert ok, "mismatch vs reference"
    print("KERNEL_OK")
</pallas_src>

<mosaic_0001>
module attributes {stable_mosaic.version = 11 : i64} {
  func.func @_generator_kernel(%arg0: i32, %arg1: memref<1x128xf32, #tpu.memory_space<vmem>>, %arg2: memref<128x1xf32, #tpu.memory_space<vmem>>, %arg3: memref<128x1xf32, #tpu.memory_space<vmem>>, %arg4: memref<128x128xf32, #tpu.memory_space<vmem>>, %arg5: memref<128x1xf32, #tpu.memory_space<vmem>>, %arg6: memref<1x128xf32, #tpu.memory_space<vmem>>, %arg7: memref<1x1xf32, #tpu.memory_space<vmem>>, %arg8: memref<1x128xf32, #tpu.memory_space<vmem>>) attributes {dimension_semantics = [#tpu.dimension_semantics<parallel>], iteration_bounds = array<i64: 1>, scalar_prefetch = 0 : i64, scratch_operands = 0 : i64, tpu.core_type = #tpu.core_type<tc>, window_params = [{transform_indices = @transform_0, window_bounds = array<i64: 1, 128>}, {pipeline_mode = #tpu.pipeline_mode<synchronous>, transform_indices = @transform_1, window_bounds = array<i64: 128, 1>}, {pipeline_mode = #tpu.pipeline_mode<synchronous>, transform_indices = @transform_2, window_bounds = array<i64: 128, 1>}, {pipeline_mode = #tpu.pipeline_mode<synchronous>, transform_indices = @transform_3, window_bounds = array<i64: 128, 128>}, {pipeline_mode = #tpu.pipeline_mode<synchronous>, transform_indices = @transform_4, window_bounds = array<i64: 128, 1>}, {pipeline_mode = #tpu.pipeline_mode<synchronous>, transform_indices = @transform_5, window_bounds = array<i64: 1, 128>}, {pipeline_mode = #tpu.pipeline_mode<synchronous>, transform_indices = @transform_6, window_bounds = array<i64: 1, 1>}, {transform_indices = @transform_7, window_bounds = array<i64: 1, 128>}]} {
    %c0 = arith.constant 0 : index
    %c0_0 = arith.constant 0 : index
    %0 = vector.load %arg1[%c0, %c0_0] : memref<1x128xf32, #tpu.memory_space<vmem>>, vector<1x128xf32>
    %c0_1 = arith.constant 0 : index
    %c0_2 = arith.constant 0 : index
    %1 = vector.load %arg2[%c0_1, %c0_2] : memref<128x1xf32, #tpu.memory_space<vmem>>, vector<128x1xf32>
    %2 = vector.broadcast %1 : vector<128x1xf32> to vector<128x128xf32>
    %3 = vector.broadcast %0 : vector<1x128xf32> to vector<128x128xf32>
    %4 = arith.mulf %2, %3 : vector<128x128xf32>
    %c0_3 = arith.constant 0 : index
    %c0_4 = arith.constant 0 : index
    %5 = vector.load %arg3[%c0_3, %c0_4] : memref<128x1xf32, #tpu.memory_space<vmem>>, vector<128x1xf32>
    %6 = vector.broadcast %5 : vector<128x1xf32> to vector<128x128xf32>
    %7 = arith.addf %4, %6 : vector<128x128xf32>
    %cst = arith.constant 2.000000e-01 : f32
    %8 = vector.broadcast %cst : f32 to vector<128x128xf32>
    %9 = arith.mulf %8, %7 : vector<128x128xf32>
    %10 = arith.maximumf %7, %9 : vector<128x128xf32>
    %c0_5 = arith.constant 0 : index
    %c0_6 = arith.constant 0 : index
    %11 = vector.load %arg4[%c0_5, %c0_6] : memref<128x128xf32, #tpu.memory_space<vmem>>, vector<128x128xf32>
    %cst_7 = arith.constant dense<0.000000e+00> : vector<128x128xf32>
    %12 = tpu.matmul %11, %10, %cst_7 {dimension_numbers = #tpu.dot_dimension_numbers<[1], [0], [0], [1], [0, 0, 1, 1], [], []>} : vector<128x128xf32>, vector<128x128xf32>, vector<128x128xf32> -> vector<128x128xf32>
    %c0_8 = arith.constant 0 : index
    %c0_9 = arith.constant 0 : index
    %13 = vector.load %arg5[%c0_8, %c0_9] : memref<128x1xf32, #tpu.memory_space<vmem>>, vector<128x1xf32>
    %14 = vector.broadcast %13 : vector<128x1xf32> to vector<128x128xf32>
    %15 = arith.addf %12, %14 : vector<128x128xf32>
    %cst_10 = arith.constant 2.000000e-01 : f32
    %16 = vector.broadcast %cst_10 : f32 to vector<128x128xf32>
    %17 = arith.mulf %16, %15 : vector<128x128xf32>
    %18 = arith.maximumf %15, %17 : vector<128x128xf32>
    %c0_11 = arith.constant 0 : index
    %c0_12 = arith.constant 0 : index
    %19 = vector.load %arg6[%c0_11, %c0_12] : memref<1x128xf32, #tpu.memory_space<vmem>>, vector<1x128xf32>
    %cst_13 = arith.constant dense<0.000000e+00> : vector<1x128xf32>
    %20 = tpu.matmul %19, %18, %cst_13 {dimension_numbers = #tpu.dot_dimension_numbers<[1], [0], [0], [1], [0, 0, 1, 1], [], []>} : vector<1x128xf32>, vector<128x128xf32>, vector<1x128xf32> -> vector<1x128xf32>
    %c0_14 = arith.constant 0 : index
    %c0_15 = arith.constant 0 : index
    %21 = vector.load %arg7[%c0_14, %c0_15] : memref<1x1xf32, #tpu.memory_space<vmem>>, vector<1x1xf32>
    %22 = vector.broadcast %21 : vector<1x1xf32> to vector<1x128xf32>
    %23 = arith.addf %20, %22 : vector<1x128xf32>
    %c0_16 = arith.constant 0 : index
    %c0_17 = arith.constant 0 : index
    %24 = vector.load %arg8[%c0_16, %c0_17] : memref<1x128xf32, #tpu.memory_space<vmem>>, vector<1x128xf32>
    tpu.vector_store %arg8[%c0_16, %c0_17], %23 {strides = array<i32>} : memref<1x128xf32, #tpu.memory_space<vmem>>, vector<1x128xf32>,
    return
  }
  func.func @transform_0(%arg0: i32) -> (i32, i32) {
    %c0_i32 = arith.constant 0 : i32
    %c0_i32_0 = arith.constant 0 : i32
    return %c0_i32, %arg0 : i32, i32
  }
  func.func @transform_1(%arg0: i32) -> (i32, i32) {
    %c0_i32 = arith.constant 0 : i32
    %c0_i32_0 = arith.constant 0 : i32
    %c0_i32_1 = arith.constant 0 : i32
    return %c0_i32, %c0_i32_0 : i32, i32
  }
  func.func @transform_2(%arg0: i32) -> (i32, i32) {
    %c0_i32 = arith.constant 0 : i32
    %c0_i32_0 = arith.constant 0 : i32
    %c0_i32_1 = arith.constant 0 : i32
    return %c0_i32, %c0_i32_0 : i32, i32
  }
  func.func @transform_3(%arg0: i32) -> (i32, i32) {
    %c0_i32 = arith.constant 0 : i32
    %c0_i32_0 = arith.constant 0 : i32
    %c0_i32_1 = arith.constant 0 : i32
    return %c0_i32, %c0_i32_0 : i32, i32
  }
  func.func @transform_4(%arg0: i32) -> (i32, i32) {
    %c0_i32 = arith.constant 0 : i32
    %c0_i32_0 = arith.constant 0 : i32
    %c0_i32_1 = arith.constant 0 : i32
    return %c0_i32, %c0_i32_0 : i32, i32
  }
  func.func @transform_5(%arg0: i32) -> (i32, i32) {
    %c0_i32 = arith.constant 0 : i32
    %c0_i32_0 = arith.constant 0 : i32
    %c0_i32_1 = arith.constant 0 : i32
    return %c0_i32, %c0_i32_0 : i32, i32
  }
  func.func @transform_6(%arg0: i32) -> (i32, i32) {
    %c0_i32 = arith.constant 0 : i32
    %c0_i32_0 = arith.constant 0 : i32
    %c0_i32_1 = arith.constant 0 : i32
    return %c0_i32, %c0_i32_0 : i32, i32
  }
  func.func @transform_7(%arg0: i32) -> (i32, i32) {
    %c0_i32 = arith.constant 0 : i32
    %c0_i32_0 = arith.constant 0 : i32
    return %c0_i32, %arg0 : i32, i32
  }
}

</mosaic_0001>

<llo_original>
// kernel: tpu_custom_call.1
$region0: #{tpu_custom_call.1}
  #allocation0 [shape = 'u32[]', space=smem, size = 0x4, offset = 0x4, fixed_abs, tag = 'smem constant byte address 0x4 - core index']
  #allocation1 [shape = 'u32[144,128]{1,0:T(1,128)}', space=vmem, size = 0x12000, scoped, tag = 'internal scratch']
  #allocation2 [shape = 'f32[1,1]{1,0:T(1,128)S(1)}', space=vmem, size = 0x200, scoped, tag = 'scoped memory for tpu_custom_call.1']
  %s0 = inlined_call_operand.vmem [shape: f32[1,128], index: 0, kind: input, shape index: {}]
  %s1 = inlined_call_operand.vmem [shape: f32[128,1], index: 1, kind: input, shape index: {}]
  %s2 = inlined_call_operand.vmem [shape: f32[128,1], index: 2, kind: input, shape index: {}]
  %s3 = inlined_call_operand.vmem [shape: f32[128,128], index: 3, kind: input, shape index: {}]
  %s4 = inlined_call_operand.vmem [shape: f32[128,1], index: 4, kind: input, shape index: {}]
  %s5 = inlined_call_operand.vmem [shape: f32[1,128], index: 5, kind: input, shape index: {}]
  %s6 = inlined_call_operand.<no memory space> [shape: f32[1,1], index: 6, kind: input, shape index: {}]
  %s7 = inlined_call_operand.hbm [shape: f32[1,128], index: 7, kind: output, shape index: {}]
  %s8 = sld [smem:[#allocation0]]
  $region38: #{tpu_custom_call.1} parent=0
    _
  %s10 = ssub.s32 1, %s8
  %s11 = scalar_select 0, %s10, %s8
  %v12 = vstv %s6
  %13 = vst [vmem:[#allocation2] sm:$0x1] %v12
  $region1: #{tpu_custom_call.1} parent=0
    #allocation3 [shape = 'u8[512]{0}', space=vmem, size = 0x400, scoped, tag = 'output window, operand 0, single buffered']
    #allocation4 [shape = 's32[1]{0}', space=sflag, size = 0x4, scoped, tag = 'scoped memory for tpu_custom_call.1']
    %14 = vsyncpa [#allocation4], 0
    // Predicated region
    $region2: #{tpu_custom_call.1} parent=1 // pred_check
      _
    $region3: #{tpu_custom_call.1} parent=1 // pred_check_branch
      %16 = sbr.rel (0) target = $region5
    $region4: #{tpu_custom_call.1} parent=1 // pred_region
      _
    $region5: #{tpu_custom_call.1} parent=1 // pred_fallthru
      _
    // Predicated region
    $region6: #{tpu_custom_call.1} parent=1 // pred_check
      _
    $region7: #{tpu_custom_call.1} parent=1 // pred_check_branch
      %18 = sbr.rel (0) target = $region9
    $region8: #{tpu_custom_call.1} parent=1 // pred_region
      _
    $region9: #{tpu_custom_call.1} parent=1 // pred_fallthru
      _
    // Predicated region
    $region10: #{tpu_custom_call.1} parent=1 // pred_check
      _
    $region11: #{tpu_custom_call.1} parent=1 // pred_check_branch
      %20 = sbr.rel (0) target = $region13
    $region12: #{tpu_custom_call.1} parent=1 // pred_region
      _
    $region13: #{tpu_custom_call.1} parent=1 // pred_fallthru
      _
    // Predicated region
    $region14: #{tpu_custom_call.1} parent=1 // pred_check
      _
    $region15: #{tpu_custom_call.1} parent=1 // pred_check_branch
      %22 = sbr.rel (0) target = $region17
    $region16: #{tpu_custom_call.1} parent=1 // pred_region
      _
    $region17: #{tpu_custom_call.1} parent=1 // pred_fallthru
      _
    // Predicated region
    $region18: #{tpu_custom_call.1} parent=1 // pred_check
      _
    $region19: #{tpu_custom_call.1} parent=1 // pred_check_branch
      %24 = sbr.rel (0) target = $region21
    $region20: #{tpu_custom_call.1} parent=1 // pred_region
      _
    $region21: #{tpu_custom_call.1} parent=1 // pred_fallthru
      _
    // Predicated region
    $region22: #{tpu_custom_call.1} parent=1 // pred_check
      _
    $region23: #{tpu_custom_call.1} parent=1 // pred_check_branch
      %26 = sbr.rel (0) target = $region25
    $region24: #{tpu_custom_call.1} parent=1 // pred_region
      _
    $region25: #{tpu_custom_call.1} parent=1 // pred_fallthru
      _
    // Predicated region
    $region26: #{tpu_custom_call.1} parent=1 // pred_check
      _
    $region27: #{tpu_custom_call.1} parent=1 // pred_check_branch
      %28 = sbr.rel (0) target = $region29
    $region28: #{tpu_custom_call.1} parent=1 // pred_region
      _
    $region29: #{tpu_custom_call.1} parent=1 // pred_fallthru
      _
    %v29 = vld [vmem:[%s0] sm:$0x1]
    %v30 = vld [vmem:[%s1] sm:$0xff]
    %v31 = vld [vmem:[%s1 + $0x8] sm:$0xff]
    %v32 = vld [vmem:[%s1 + $0x10] sm:$0xff]
    %v33 = vld [vmem:[%s1 + $0x18] sm:$0xff]
    %v34 = vld [vmem:[%s1 + $0x20] sm:$0xff]
    %v35 = vld [vmem:[%s1 + $0x28] sm:$0xff]
    %v36 = vld [vmem:[%s1 + $0x30] sm:$0xff]
    %v37 = vld [vmem:[%s1 + $0x38] sm:$0xff]
    %v38 = vld [vmem:[%s1 + $0x40] sm:$0xff]
    %v39 = vld [vmem:[%s1 + $0x48] sm:$0xff]
    %v40 = vld [vmem:[%s1 + $0x50] sm:$0xff]
    %v41 = vld [vmem:[%s1 + $0x58] sm:$0xff]
    %v42 = vld [vmem:[%s1 + $0x60] sm:$0xff]
    %v43 = vld [vmem:[%s1 + $0x68] sm:$0xff]
    %v44 = vld [vmem:[%s1 + $0x70] sm:$0xff]
    %v45 = vld [vmem:[%s1 + $0x78] sm:$0xff]
    %47 = vset.pattern.permute.xlu0 0
    %48 = vperm.xlu0 %47, %v30
    %v49 = vpop.permute.xlu0 %48
    %52 = vset.pattern.permute.xlu0 0
    %53 = vperm.xlu0 %52, %v31
    %v54 = vpop.permute.xlu0 %53
    %57 = vset.pattern.permute.xlu0 0
    %58 = vperm.xlu0 %57, %v32
    %v59 = vpop.permute.xlu0 %58
    %62 = vset.pattern.permute.xlu0 0
    %63 = vperm.xlu0 %62, %v33
    %v64 = vpop.permute.xlu0 %63
    %67 = vset.pattern.permute.xlu0 0
    %68 = vperm.xlu0 %67, %v34
    %v69 = vpop.permute.xlu0 %68
    %72 = vset.pattern.permute.xlu0 0
    %73 = vperm.xlu0 %72, %v35
    %v74 = vpop.permute.xlu0 %73
    %77 = vset.pattern.permute.xlu0 0
    %78 = vperm.xlu0 %77, %v36
    %v79 = vpop.permute.xlu0 %78
    %82 = vset.pattern.permute.xlu0 0
    %83 = vperm.xlu0 %82, %v37
    %v84 = vpop.permute.xlu0 %83
    %87 = vset.pattern.permute.xlu0 0
    %88 = vperm.xlu0 %87, %v38
    %v89 = vpop.permute.xlu0 %88
    %92 = vset.pattern.permute.xlu0 0
    %93 = vperm.xlu0 %92, %v39
    %v94 = vpop.permute.xlu0 %93
    %97 = vset.pattern.permute.xlu0 0
    %98 = vperm.xlu0 %97, %v40
    %v99 = vpop.permute.xlu0 %98
    %102 = vset.pattern.permute.xlu0 0
    %103 = vperm.xlu0 %102, %v41
    %v104 = vpop.permute.xlu0 %103
    %107 = vset.pattern.permute.xlu0 0
    %108 = vperm.xlu0 %107, %v42
    %v109 = vpop.permute.xlu0 %108
    %112 = vset.pattern.permute.xlu0 0
    %113 = vperm.xlu0 %112, %v43
    %v114 = vpop.permute.xlu0 %113
    %117 = vset.pattern.permute.xlu0 0
    %118 = vperm.xlu0 %117, %v44
    %v119 = vpop.permute.xlu0 %118
    %122 = vset.pattern.permute.xlu0 0
    %123 = vperm.xlu0 %122, %v45
    %v124 = vpop.permute.xlu0 %123
    %v127 = vlaneseq
    %v128 = vshrl.u32 %v127, 7
    %v129 = vsub.s32 0, %v128
    %v130 = vrot.slane %v29, %v129
    %v132 = vmul.f32 %v49, %v130
    %v133 = vmul.f32 %v54, %v130
    %v134 = vmul.f32 %v59, %v130
    %v135 = vmul.f32 %v64, %v130
    %v136 = vmul.f32 %v69, %v130
    %v137 = vmul.f32 %v74, %v130
    %v138 = vmul.f32 %v79, %v130
    %v139 = vmul.f32 %v84, %v130
    %v140 = vmul.f32 %v89, %v130
    %v141 = vmul.f32 %v94, %v130
    %v142 = vmul.f32 %v99, %v130
    %v143 = vmul.f32 %v104, %v130
    %v144 = vmul.f32 %v109, %v130
    %v145 = vmul.f32 %v114, %v130
    %v146 = vmul.f32 %v119, %v130
    %v147 = vmul.f32 %v124, %v130
    %v148 = vld [vmem:[%s2] sm:$0xff]
    %v149 = vld [vmem:[%s2 + $0x8] sm:$0xff]
    %v150 = vld [vmem:[%s2 + $0x10] sm:$0xff]
    %v151 = vld [vmem:[%s2 + $0x18] sm:$0xff]
    %v152 = vld [vmem:[%s2 + $0x20] sm:$0xff]
    %v153 = vld [vmem:[%s2 + $0x28] sm:$0xff]
    %v154 = vld [vmem:[%s2 + $0x30] sm:$0xff]
    %v155 = vld [vmem:[%s2 + $0x38] sm:$0xff]
    %v156 = vld [vmem:[%s2 + $0x40] sm:$0xff]
    %v157 = vld [vmem:[%s2 + $0x48] sm:$0xff]
    %v158 = vld [vmem:[%s2 + $0x50] sm:$0xff]
    %v159 = vld [vmem:[%s2 + $0x58] sm:$0xff]
    %v160 = vld [vmem:[%s2 + $0x60] sm:$0xff]
    %v161 = vld [vmem:[%s2 + $0x68] sm:$0xff]
    %v162 = vld [vmem:[%s2 + $0x70] sm:$0xff]
    %v163 = vld [vmem:[%s2 + $0x78] sm:$0xff]
    %165 = vset.pattern.permute.xlu0 0
    %166 = vperm.xlu0 %165, %v148
    %v167 = vpop.permute.xlu0 %166
    %170 = vset.pattern.permute.xlu0 0
    %171 = vperm.xlu0 %170, %v149
    %v172 = vpop.permute.xlu0 %171
    %175 = vset.pattern.permute.xlu0 0
    %176 = vperm.xlu0 %175, %v150
    %v177 = vpop.permute.xlu0 %176
    %180 = vset.pattern.permute.xlu0 0
    %181 = vperm.xlu0 %180, %v151
    %v182 = vpop.permute.xlu0 %181
    %185 = vset.pattern.permute.xlu0 0
    %186 = vperm.xlu0 %185, %v152
    %v187 = vpop.permute.xlu0 %186
    %190 = vset.pattern.permute.xlu0 0
    %191 = vperm.xlu0 %190, %v153
    %v192 = vpop.permute.xlu0 %191
    %195 = vset.pattern.permute.xlu0 0
    %196 = vperm.xlu0 %195, %v154
    %v197 = vpop.permute.xlu0 %196
    %200 = vset.pattern.permute.xlu0 0
    %201 = vperm.xlu0 %200, %v155
    %v202 = vpop.permute.xlu0 %201
    %205 = vset.pattern.permute.xlu0 0
    %206 = vperm.xlu0 %205, %v156
    %v207 = vpop.permute.xlu0 %206
    %210 = vset.pattern.permute.xlu0 0
    %211 = vperm.xlu0 %210, %v157
    %v212 = vpop.permute.xlu0 %211
    %215 = vset.pattern.permute.xlu0 0
    %216 = vperm.xlu0 %215, %v158
    %v217 = vpop.permute.xlu0 %216
    %220 = vset.pattern.permute.xlu0 0
    %221 = vperm.xlu0 %220, %v159
    %v222 = vpop.permute.xlu0 %221
    %225 = vset.pattern.permute.xlu0 0
    %226 = vperm.xlu0 %225, %v160
    %v227 = vpop.permute.xlu0 %226
    %230 = vset.pattern.permute.xlu0 0
    %231 = vperm.xlu0 %230, %v161
    %v232 = vpop.permute.xlu0 %231
    %235 = vset.pattern.permute.xlu0 0
    %236 = vperm.xlu0 %235, %v162
    %v237 = vpop.permute.xlu0 %236
    %240 = vset.pattern.permute.xlu0 0
    %241 = vperm.xlu0 %240, %v163
    %v242 = vpop.permute.xlu0 %241
    %v244 = vadd.f32 %v132, %v167
    %v245 = vadd.f32 %v133, %v172
    %v246 = vadd.f32 %v134, %v177
    %v247 = vadd.f32 %v135, %v182
    %v248 = vadd.f32 %v136, %v187
    %v249 = vadd.f32 %v137, %v192
    %v250 = vadd.f32 %v138, %v197
    %v251 = vadd.f32 %v139, %v202
    %v252 = vadd.f32 %v140, %v207
    %v253 = vadd.f32 %v141, %v212
    %v254 = vadd.f32 %v142, %v217
    %v255 = vadd.f32 %v143, %v222
    %v256 = vadd.f32 %v144, %v227
    %v257 = vadd.f32 %v145, %v232
    %v258 = vadd.f32 %v146, %v237
    %v259 = vadd.f32 %v147, %v242
    %v260 = vmul.f32 %v244, 0.2
    %v261 = vmul.f32 %v245, 0.2
    %v262 = vmul.f32 %v246, 0.2
    %v263 = vmul.f32 %v247, 0.2
    %v264 = vmul.f32 %v248, 0.2
    %v265 = vmul.f32 %v249, 0.2
    %v266 = vmul.f32 %v250, 0.2
    %v267 = vmul.f32 %v251, 0.2
    %v268 = vmul.f32 %v252, 0.2
    %v269 = vmul.f32 %v253, 0.2
    %v270 = vmul.f32 %v254, 0.2
    %v271 = vmul.f32 %v255, 0.2
    %v272 = vmul.f32 %v256, 0.2
    %v273 = vmul.f32 %v257, 0.2
    %v274 = vmul.f32 %v258, 0.2
    %v275 = vmul.f32 %v259, 0.2
    %v276 = vmax.f32 %v244, %v260
    %v277 = vmax.f32 %v245, %v261
    %v278 = vmax.f32 %v246, %v262
    %v279 = vmax.f32 %v247, %v263
    %v280 = vmax.f32 %v248, %v264
    %v281 = vmax.f32 %v249, %v265
    %v282 = vmax.f32 %v250, %v266
    %v283 = vmax.f32 %v251, %v267
    %v284 = vmax.f32 %v252, %v268
    %v285 = vmax.f32 %v253, %v269
    %v286 = vmax.f32 %v254, %v270
    %v287 = vmax.f32 %v255, %v271
    %v288 = vmax.f32 %v256, %v272
    %v289 = vmax.f32 %v257, %v273
    %v290 = vmax.f32 %v258, %v274
    %v291 = vmax.f32 %v259, %v275
    %v292 = vld [vmem:[%s3] sm:$0xff]
    %v293 = vld [vmem:[%s3 + $0x8] sm:$0xff]
    %v294 = vld [vmem:[%s3 + $0x10] sm:$0xff]
    %v295 = vld [vmem:[%s3 + $0x18] sm:$0xff]
    %v296 = vld [vmem:[%s3 + $0x20] sm:$0xff]
    %v297 = vld [vmem:[%s3 + $0x28] sm:$0xff]
    %v298 = vld [vmem:[%s3 + $0x30] sm:$0xff]
    %v299 = vld [vmem:[%s3 + $0x38] sm:$0xff]
    %v300 = vld [vmem:[%s3 + $0x40] sm:$0xff]
    %v301 = vld [vmem:[%s3 + $0x48] sm:$0xff]
    %v302 = vld [vmem:[%s3 + $0x50] sm:$0xff]
    %v303 = vld [vmem:[%s3 + $0x58] sm:$0xff]
    %v304 = vld [vmem:[%s3 + $0x60] sm:$0xff]
    %v305 = vld [vmem:[%s3 + $0x68] sm:$0xff]
    %v306 = vld [vmem:[%s3 + $0x70] sm:$0xff]
    %v307 = vld [vmem:[%s3 + $0x78] sm:$0xff]
    %v308 = vld [vmem:[%s4] sm:$0xff]
    %v309 = vld [vmem:[%s4 + $0x8] sm:$0xff]
    %v310 = vld [vmem:[%s4 + $0x10] sm:$0xff]
    %v311 = vld [vmem:[%s4 + $0x18] sm:$0xff]
    %v312 = vld [vmem:[%s4 + $0x20] sm:$0xff]
    %v313 = vld [vmem:[%s4 + $0x28] sm:$0xff]
    %v314 = vld [vmem:[%s4 + $0x30] sm:$0xff]
    %v315 = vld [vmem:[%s4 + $0x38] sm:$0xff]
    %v316 = vld [vmem:[%s4 + $0x40] sm:$0xff]
    %v317 = vld [vmem:[%s4 + $0x48] sm:$0xff]
    %v318 = vld [vmem:[%s4 + $0x50] sm:$0xff]
    %v319 = vld [vmem:[%s4 + $0x58] sm:$0xff]
    %v320 = vld [vmem:[%s4 + $0x60] sm:$0xff]
    %v321 = vld [vmem:[%s4 + $0x68] sm:$0xff]
    %v322 = vld [vmem:[%s4 + $0x70] sm:$0xff]
    %v323 = vld [vmem:[%s4 + $0x78] sm:$0xff]
    %325 = vset.pattern.permute.xlu0 0
    %326 = vperm.xlu0 %325, %v308
    %v327 = vpop.permute.xlu0 %326
    %330 = vset.pattern.permute.xlu0 0
    %331 = vperm.xlu0 %330, %v309
    %v332 = vpop.permute.xlu0 %331
    %335 = vset.pattern.permute.xlu0 0
    %336 = vperm.xlu0 %335, %v310
    %v337 = vpop.permute.xlu0 %336
    %340 = vset.pattern.permute.xlu0 0
    %341 = vperm.xlu0 %340, %v311
    %v342 = vpop.permute.xlu0 %341
    %345 = vset.pattern.permute.xlu0 0
    %346 = vperm.xlu0 %345, %v312
    %v347 = vpop.permute.xlu0 %346
    %350 = vset.pattern.permute.xlu0 0
    %351 = vperm.xlu0 %350, %v313
    %v352 = vpop.permute.xlu0 %351
    %355 = vset.pattern.permute.xlu0 0
    %356 = vperm.xlu0 %355, %v314
    %v357 = vpop.permute.xlu0 %356
    %360 = vset.pattern.permute.xlu0 0
    %361 = vperm.xlu0 %360, %v315
    %v362 = vpop.permute.xlu0 %361
    %365 = vset.pattern.permute.xlu0 0
    %366 = vperm.xlu0 %365, %v316
    %v367 = vpop.permute.xlu0 %366
    %370 = vset.pattern.permute.xlu0 0
    %371 = vperm.xlu0 %370, %v317
    %v372 = vpop.permute.xlu0 %371
    %375 = vset.pattern.permute.xlu0 0
    %376 = vperm.xlu0 %375, %v318
    %v377 = vpop.permute.xlu0 %376
    %380 = vset.pattern.permute.xlu0 0
    %381 = vperm.xlu0 %380, %v319
    %v382 = vpop.permute.xlu0 %381
    %385 = vset.pattern.permute.xlu0 0
    %386 = vperm.xlu0 %385, %v320
    %v387 = vpop.permute.xlu0 %386
    %390 = vset.pattern.permute.xlu0 0
    %391 = vperm.xlu0 %390, %v321
    %v392 = vpop.permute.xlu0 %391
    %395 = vset.pattern.permute.xlu0 0
    %396 = vperm.xlu0 %395, %v322
    %v397 = vpop.permute.xlu0 %396
    %400 = vset.pattern.permute.xlu0 0
    %401 = vperm.xlu0 %400, %v323
    %v402 = vpop.permute.xlu0 %401
    %404 = vmatprep.subr.mxu0 0.0
    %405 = vmatpush1.msra.mxu0 %v276
    %406 = vmatprep.subr.mxu0 0.0
    %407 = vmatpush1.msra.mxu0 %v277
    %408 = vmatprep.subr.mxu0 0.0
    %409 = vmatpush1.msra.mxu0 %v278
    %410 = vmatprep.subr.mxu0 0.0
    %411 = vmatpush1.msra.mxu0 %v279
    %412 = vmatprep.subr.mxu0 0.0
    %413 = vmatpush1.msra.mxu0 %v280
    %414 = vmatprep.subr.mxu0 0.0
    %415 = vmatpush1.msra.mxu0 %v281
    %416 = vmatprep.subr.mxu0 0.0
    %417 = vmatpush1.msra.mxu0 %v282
    %418 = vmatprep.subr.mxu0 0.0
    %419 = vmatpush1.msra.mxu0 %v283
    %420 = vmatprep.subr.mxu0 0.0
    %421 = vmatpush1.msra.mxu0 %v284
    %422 = vmatprep.subr.mxu0 0.0
    %423 = vmatpush1.msra.mxu0 %v285
    %424 = vmatprep.subr.mxu0 0.0
    %425 = vmatpush1.msra.mxu0 %v286
    %426 = vmatprep.subr.mxu0 0.0
    %427 = vmatpush1.msra.mxu0 %v287
    %428 = vmatprep.subr.mxu0 0.0
    %429 = vmatpush1.msra.mxu0 %v288
    %430 = vmatprep.subr.mxu0 0.0
    %431 = vmatpush1.msra.mxu0 %v289
    %432 = vmatprep.subr.mxu0 0.0
    %433 = vmatpush1.msra.mxu0 %v290
    %434 = vmatprep.subr.mxu0 0.0
    %435 = vmatpush1.msra.mxu0 %v291
    %436 = vmatprep.subr.mxu0 0.0
    %437 = vmatpush1.msra.mxu0 0.0
    %438 = vmatprep.subr.mxu0 0.0
    %439 = vmatpush1.msra.mxu0 0.0
    %440 = vmatprep.subr.mxu0 0.0
    %441 = vmatpush1.msra.mxu0 0.0
    %442 = vmatprep.subr.mxu0 0.0
    %443 = vmatpush1.msra.mxu0 0.0
    %444 = vmatprep.subr.mxu0 0.0
    %445 = vmatpush1.msra.mxu0 0.0
    %446 = vmatprep.subr.mxu0 0.0
    %447 = vmatpush1.msra.mxu0 0.0
    %448 = vmatprep.subr.mxu0 0.0
    %449 = vmatpush1.msra.mxu0 0.0
    %450 = vmatprep.subr.mxu0 0.0
    %451 = vmatpush1.msra.mxu0 0.0
    %452 = vmatprep.subr.mxu0 0.0
    %453 = vmatpush1.msra.mxu0 0.0
    %454 = vmatprep.subr.mxu0 0.0
    %455 = vmatpush1.msra.mxu0 0.0
    %456 = vmatprep.subr.mxu0 0.0
    %457 = vmatpush1.msra.mxu0 0.0
    %458 = vmatprep.subr.mxu0 0.0
    %459 = vmatpush1.msra.mxu0 0.0
    %460 = vmatprep.subr.mxu0 0.0
    %461 = vmatpush1.msra.mxu0 0.0
    %462 = vmatprep.subr.mxu0 0.0
    %463 = vmatpush1.msra.mxu0 0.0
    %464 = vmatprep.subr.mxu0 0.0
    %465 = vmatpush1.msra.mxu0 0.0
    %466 = vmatprep.subr.mxu0 0.0
    %467 = vmatpush1.msra.mxu0 0.0
    %468 = vmatprep.mubr.f32.mxu0 0.0
    %469 = vmatmul.mubr.f32.gmra.mrb[0].mxu0 %v292
    %v470 = vpop.f32.mrb[0].mxu0
    %v471 = vadd.f32 %v327, %v470
    %v472 = vpop.f32.mrb[0].mxu0
    %473 = vmatprep.mubr.f32.mxu0 0.0
    %474 = vmatmul.mubr.f32.gmra.mrb[0].mxu0 %v293
    %v475 = vpop.f32.mrb[0].mxu0
    %v476 = vadd.f32 %v332, %v475
    %v477 = vpop.f32.mrb[0].mxu0
    %478 = vmatprep.mubr.f32.mxu0 0.0
    %479 = vmatmul.mubr.f32.gmra.mrb[0].mxu0 %v294
    %v480 = vpop.f32.mrb[0].mxu0
    %v481 = vadd.f32 %v337, %v480
    %v482 = vpop.f32.mrb[0].mxu0
    %483 = vmatprep.mubr.f32.mxu0 0.0
    %484 = vmatmul.mubr.f32.gmra.mrb[0].mxu0 %v295
    %v485 = vpop.f32.mrb[0].mxu0
    %v486 = vadd.f32 %v342, %v485
    %v487 = vpop.f32.mrb[0].mxu0
    %488 = vmatprep.mubr.f32.mxu0 0.0
    %489 = vmatmul.mubr.f32.gmra.mrb[0].mxu0 %v296
    %v490 = vpop.f32.mrb[0].mxu0
    %v491 = vadd.f32 %v347, %v490
    %v492 = vpop.f32.mrb[0].mxu0
    %493 = vmatprep.mubr.f32.mxu0 0.0
    %494 = vmatmul.mubr.f32.gmra.mrb[0].mxu0 %v297
    %v495 = vpop.f32.mrb[0].mxu0
    %v496 = vadd.f32 %v352, %v495
    %v497 = vpop.f32.mrb[0].mxu0
    %498 = vmatprep.mubr.f32.mxu0 0.0
    %499 = vmatmul.mubr.f32.gmra.mrb[0].mxu0 %v298
    %v500 = vpop.f32.mrb[0].mxu0
    %v501 = vadd.f32 %v357, %v500
    %v502 = vpop.f32.mrb[0].mxu0
    %503 = vmatprep.mubr.f32.mxu0 0.0
    %504 = vmatmul.mubr.f32.gmra.mrb[0].mxu0 %v299
    %v505 = vpop.f32.mrb[0].mxu0
    %v506 = vadd.f32 %v362, %v505
    %v507 = vpop.f32.mrb[0].mxu0
    %508 = vmatprep.mubr.f32.mxu0 0.0
    %509 = vmatmul.mubr.f32.gmra.mrb[0].mxu0 %v300
    %v510 = vpop.f32.mrb[0].mxu0
    %v511 = vadd.f32 %v367, %v510
    %v512 = vpop.f32.mrb[0].mxu0
    %513 = vmatprep.mubr.f32.mxu0 0.0
    %514 = vmatmul.mubr.f32.gmra.mrb[0].mxu0 %v301
    %v515 = vpop.f32.mrb[0].mxu0
    %v516 = vadd.f32 %v372, %v515
    %v517 = vpop.f32.mrb[0].mxu0
    %518 = vmatprep.mubr.f32.mxu0 0.0
    %519 = vmatmul.mubr.f32.gmra.mrb[0].mxu0 %v302
    %v520 = vpop.f32.mrb[0].mxu0
    %v521 = vadd.f32 %v377, %v520
    %v522 = vpop.f32.mrb[0].mxu0
    %523 = vmatprep.mubr.f32.mxu0 0.0
    %524 = vmatmul.mubr.f32.gmra.mrb[0].mxu0 %v303
    %v525 = vpop.f32.mrb[0].mxu0
    %v526 = vadd.f32 %v382, %v525
    %v527 = vpop.f32.mrb[0].mxu0
    %528 = vmatprep.mubr.f32.mxu0 0.0
    %529 = vmatmul.mubr.f32.gmra.mrb[0].mxu0 %v304
    %v530 = vpop.f32.mrb[0].mxu0
    %v531 = vadd.f32 %v387, %v530
    %v532 = vpop.f32.mrb[0].mxu0
    %533 = vmatprep.mubr.f32.mxu0 0.0
    %534 = vmatmul.mubr.f32.gmra.mrb[0].mxu0 %v305
    %v535 = vpop.f32.mrb[0].mxu0
    %v536 = vadd.f32 %v392, %v535
    %v537 = vpop.f32.mrb[0].mxu0
    %538 = vmatprep.mubr.f32.mxu0 0.0
    %539 = vmatmul.mubr.f32.gmra.mrb[0].mxu0 %v306
    %v540 = vpop.f32.mrb[0].mxu0
    %v541 = vadd.f32 %v397, %v540
    %v542 = vpop.f32.mrb[0].mxu0
    %543 = vmatprep.mubr.f32.mxu0 0.0
    %544 = vmatmul.mubr.f32.gmra.mrb[0].mxu0 %v307
    %v545 = vpop.f32.mrb[0].mxu0
    %v546 = vadd.f32 %v402, %v545
    %v547 = vpop.f32.mrb[0].mxu0
    %548 = vdwg.mxu0
    %v549 = vmul.f32 %v471, 0.2
    %v550 = vmul.f32 %v476, 0.2
    %v551 = vmul.f32 %v481, 0.2
    %v552 = vmul.f32 %v486, 0.2
    %v553 = vmul.f32 %v491, 0.2
    %v554 = vmul.f32 %v496, 0.2
    %v555 = vmul.f32 %v501, 0.2
    %v556 = vmul.f32 %v506, 0.2
    %v557 = vmul.f32 %v511, 0.2
    %v558 = vmul.f32 %v516, 0.2
    %v559 = vmul.f32 %v521, 0.2
    %v560 = vmul.f32 %v526, 0.2
    %v561 = vmul.f32 %v531, 0.2
    %v562 = vmul.f32 %v536, 0.2
    %v563 = vmul.f32 %v541, 0.2
    %v564 = vmul.f32 %v546, 0.2
    %v565 = vmax.f32 %v471, %v549
    %v566 = vmax.f32 %v476, %v550
    %v567 = vmax.f32 %v481, %v551
    %v568 = vmax.f32 %v486, %v552
    %v569 = vmax.f32 %v491, %v553
    %v570 = vmax.f32 %v496, %v554
    %v571 = vmax.f32 %v501, %v555
    %v572 = vmax.f32 %v506, %v556
    %v573 = vmax.f32 %v511, %v557
    %v574 = vmax.f32 %v516, %v558
    %v575 = vmax.f32 %v521, %v559
    %v576 = vmax.f32 %v526, %v560
    %v577 = vmax.f32 %v531, %v561
    %v578 = vmax.f32 %v536, %v562
    %v579 = vmax.f32 %v541, %v563
    %v580 = vmax.f32 %v546, %v564
    %v581 = vld [vmem:[%s5] sm:$0x1]
    %v582 = vld [vmem:[#allocation2] sm:$0x1]
    %584 = vset.pattern.permute.xlu0 0
    %585 = vperm.xlu0 %584, %v582
    %v586 = vpop.permute.xlu0 %585
    %v588 = vlaneseq
    %v589 = vshrl.u32 %v588, 7
    %v590 = vsub.s32 0, %v589
    %v591 = vrot.slane %v586, %v590
    %592 = vmatprep.subr.mxu0 0.0
    %593 = vmatpush1.msra.mxu0 %v565
    %594 = vmatprep.subr.mxu0 0.0
    %595 = vmatpush1.msra.mxu0 %v566
    %596 = vmatprep.subr.mxu0 0.0
    %597 = vmatpush1.msra.mxu0 %v567
    %598 = vmatprep.subr.mxu0 0.0
    %599 = vmatpush1.msra.mxu0 %v568
    %600 = vmatprep.subr.mxu0 0.0
    %601 = vmatpush1.msra.mxu0 %v569
    %602 = vmatprep.subr.mxu0 0.0
    %603 = vmatpush1.msra.mxu0 %v570
    %604 = vmatprep.subr.mxu0 0.0
    %605 = vmatpush1.msra.mxu0 %v571
    %606 = vmatprep.subr.mxu0 0.0
    %607 = vmatpush1.msra.mxu0 %v572
    %608 = vmatprep.subr.mxu0 0.0
    %609 = vmatpush1.msra.mxu0 %v573
    %610 = vmatprep.subr.mxu0 0.0
    %611 = vmatpush1.msra.mxu0 %v574
    %612 = vmatprep.subr.mxu0 0.0
    %613 = vmatpush1.msra.mxu0 %v575
    %614 = vmatprep.subr.mxu0 0.0
    %615 = vmatpush1.msra.mxu0 %v576
    %616 = vmatprep.subr.mxu0 0.0
    %617 = vmatpush1.msra.mxu0 %v577
    %618 = vmatprep.subr.mxu0 0.0
    %619 = vmatpush1.msra.mxu0 %v578
    %620 = vmatprep.subr.mxu0 0.0
    %621 = vmatpush1.msra.mxu0 %v579
    %622 = vmatprep.subr.mxu0 0.0
    %623 = vmatpush1.msra.mxu0 %v580
    %624 = vmatprep.subr.mxu0 0.0
    %625 = vmatpush1.msra.mxu0 0.0
    %626 = vmatprep.subr.mxu0 0.0
    %627 = vmatpush1.msra.mxu0 0.0
    %628 = vmatprep.subr.mxu0 0.0
    %629 = vmatpush1.msra.mxu0 0.0
    %630 = vmatprep.subr.mxu0 0.0
    %631 = vmatpush1.msra.mxu0 0.0
    %632 = vmatprep.subr.mxu0 0.0
    %633 = vmatpush1.msra.mxu0 0.0
    %634 = vmatprep.subr.mxu0 0.0
    %635 = vmatpush1.msra.mxu0 0.0
    %636 = vmatprep.subr.mxu0 0.0
    %637 = vmatpush1.msra.mxu0 0.0
    %638 = vmatprep.subr.mxu0 0.0
    %639 = vmatpush1.msra.mxu0 0.0
    %640 = vmatprep.subr.mxu0 0.0
    %641 = vmatpush1.msra.mxu0 0.0
    %642 = vmatprep.subr.mxu0 0.0
    %643 = vmatpush1.msra.mxu0 0.0
    %644 = vmatprep.subr.mxu0 0.0
    %645 = vmatpush1.msra.mxu0 0.0
    %646 = vmatprep.subr.mxu0 0.0
    %647 = vmatpush1.msra.mxu0 0.0
    %648 = vmatprep.subr.mxu0 0.0
    %649 = vmatpush1.msra.mxu0 0.0
    %650 = vmatprep.subr.mxu0 0.0
    %651 = vmatpush1.msra.mxu0 0.0
    %652 = vmatprep.subr.mxu0 0.0
    %653 = vmatpush1.msra.mxu0 0.0
    %654 = vmatprep.subr.mxu0 0.0
    %655 = vmatpush1.msra.mxu0 0.0
    %656 = vmatprep.mubr.f32.mxu0 0.0
    %657 = vmatmul.mubr.f32.gmra.mrb[0].mxu0 %v581
    %v658 = vpop.f32.mrb[0].mxu0
    %v659 = vadd.f32 %v591, %v658
    %v660 = vpop.f32.mrb[0].mxu0
    %661 = vdwg.mxu0
    %662 = vst [vmem:[#allocation3] sm:$0x1] %v659
    // Predicated region
    $region30: #{tpu_custom_call.1} parent=1 // pred_check
      _
    $region31: #{tpu_custom_call.1} parent=1 // pred_check_branch
      %664 = sbr.rel (0) target = $region33
    $region32: #{tpu_custom_call.1} parent=1 // pred_region
      %s666 = ssub.s32 16, 16
      %667 = vsyncadd [#allocation4], %s666
      %s669 = sshll.u32 [#allocation3], 4
      %s670 = int_to_ptr.vmem [resolvable:$true] %s669
      %672 = dma.vmem_to_hbm [thread:$0]  %s670, 16, %s7, [#allocation4]
    $region33: #{tpu_custom_call.1} parent=1 // pred_fallthru
      _
    // Predicated region
    $region34: #{tpu_custom_call.1} parent=1 // pred_check
      _
    $region35: #{tpu_custom_call.1} parent=1 // pred_check_branch
      %674 = sbr.rel (0) target = $region37
    $region36: #{tpu_custom_call.1} parent=1 // pred_region
      %675 = dma.done [#allocation4], 16
    $region37: #{tpu_custom_call.1} parent=1 // pred_fallthru
      _
    %676 = vsyncpa [#allocation4], 1

</llo_original>
